<compile_context>
chip_gen: v5e
topology: v5e:2x2
jax: 0.10.0
libtpu: 0.0.40
codegen_flags: <defaults>
</compile_context>

<pallas_src>
import jax
import jax.numpy as jnp
from jax.experimental import pallas as pl
from jax.experimental.pallas import tpu as pltpu


def _inception_aux_kernel(x_ref, w_ref, o_ref):
    # x_ref: (TB, C, HW)  (input dtype)    w_ref: (C, NCp) f32 (inv_hw folded in)
    # o_ref: (TB, NCp)
    x = x_ref[...]
    tb, c, hw = x.shape

    # Spatial sum, accumulated in f32.  When HW is a multiple of 128, sum
    # lane-aligned 128-wide chunks on the VPU first, then do a single
    # cross-lane (XLU) reduce per row -> keeps the kernel DMA-bound on v7x.
    n_chunks = hw // 128
    if hw % 128 == 0 and 1 <= n_chunks <= 64:
        acc = x[..., 0:128].astype(jnp.float32)
        for i in range(1, n_chunks):
            acc = acc + x[..., i * 128:(i + 1) * 128].astype(jnp.float32)
        pooled = jnp.sum(acc, axis=-1)                      # (TB, C), one lane-reduce/row
    else:
        pooled = jnp.sum(x, axis=-1, dtype=jnp.float32)     # fallback (odd HW)

    # f32 x f32 matmul (inv_hw already folded into w); tiny vs the x DMA.
    y = jnp.dot(pooled, w_ref[...], preferred_element_type=jnp.float32)
    o_ref[...] = y.astype(o_ref.dtype)


def _pick_block_b(B, C, hw, itemsize, target_bytes=4 * 1024 * 1024):
    """Batch tile sized for ~4 MiB x tiles (double-buffer fits all scoped-VMEM defaults)."""
    rows = max(1, target_bytes // max(1, C * hw * itemsize))
    if B >= 16:
        rows = min(rows, pl.cdiv(B, 2))       # >= 2 grid steps -> both v7x TCs busy
    rows = min(rows, B)
    if B >= 8:
        rows = max(8, (rows // 8) * 8)        # sublane-friendly batch tile
    return int(rows)


def inception_aux_forward(x_nchw, fc_weight, ih, *, block_b=None):
    """x_nchw: (B, C, H, W); fc_weight: (num_classes, C) (PyTorch Linear layout)."""
    B, C, H, W = x_nchw.shape
    NC, C2 = fc_weight.shape
    assert C == C2
    # AvgPool2d(ih, 1) followed by .view(-1, C) requires a 1x1 pooled output.
    assert H == ih and W == ih, "InceptionAux expects an ih x ih feature map"
    hw = H * W

    x_flat = x_nchw.reshape(B, C, hw)                       # contiguous reshape, no copy

    # Fold the average-pool scale into the (pre-transposed) FC weight; keep f32
    # so the Linear matches the f32 reference (matmul cost is negligible here).
    NC_pad = ((NC + 127) // 128) * 128
    w = jnp.transpose(fc_weight).astype(jnp.float32) * jnp.float32(1.0 / hw)   # (C, NC)
    if NC_pad != NC:
        w = jnp.pad(w, ((0, 0), (0, NC_pad - NC)))          # lane-dense output stores

    if block_b is None:
        block_b = _pick_block_b(B, C, hw, x_flat.dtype.itemsize)
    grid = (pl.cdiv(B, block_b),)

    cost = pl.CostEstimate(
        flops=B * C * hw + 2 * B * C * NC_pad,              # pool adds + matmul
        transcendentals=0,
        bytes_accessed=(x_flat.size * x_flat.dtype.itemsize
                        + w.size * w.dtype.itemsize
                        + B * NC_pad * x_nchw.dtype.itemsize),
    )

    out = pl.pallas_call(
        _inception_aux_kernel,
        out_shape=jax.ShapeDtypeStruct((B, NC_pad), x_nchw.dtype),
        grid_spec=pltpu.PrefetchScalarGridSpec(
            num_scalar_prefetch=0,
            grid=grid,
            in_specs=[
                pl.BlockSpec((block_b, C, hw), lambda b: (b, 0, 0)),   # x batch tile
                pl.BlockSpec((C, NC_pad), lambda b: (0, 0)),           # FC weight (shared)
            ],
            out_specs=pl.BlockSpec((block_b, NC_pad), lambda b: (b, 0)),
        ),
        compiler_params=pltpu.CompilerParams(dimension_semantics=("parallel",)),
        cost_estimate=cost,
    )(x_flat, w)

    return out[:, :NC]                                       # drop lane padding


def reference_forward(x_nchw, fc_weight):
    """Pure-JAX mirror of the PyTorch module (for correctness checking)."""
    pooled = jnp.mean(x_nchw, axis=(2, 3))                  # AvgPool2d(ih, 1) -> (B, C)
    return pooled @ fc_weight.T                             # Linear(C, NC, bias=False)


if __name__ == "__main__":
    # Small shapes consistent with the module: InceptionAux(ih=16, num_classes=10, channels=16)
    B, C, ih, num_classes = 2, 16, 16, 10

    key = jax.random.PRNGKey(0)
    kx, kw = jax.random.split(key)
    x = jax.random.normal(kx, (B, C, ih, ih), jnp.float32)               # NCHW like PyTorch
    fc_w = jax.random.normal(kw, (num_classes, C), jnp.float32) / jnp.sqrt(C)

    y = inception_aux_forward(x, fc_w, ih)
    y = jax.block_until_ready(y)

    y_ref = reference_forward(x, fc_w)
    assert y.shape == (B, num_classes), y.shape
    max_err = float(jnp.max(jnp.abs(y - y_ref)))
    assert jnp.allclose(y, y_ref, rtol=1e-3, atol=1e-3), max_err
    print("KERNEL_OK")
</pallas_src>

<mosaic_0001>
module attributes {stable_mosaic.version = 11 : i64} {
  func.func @_inception_aux_kernel(%arg0: i32, %arg1: memref<2x16x256xf32, #tpu.memory_space<vmem>>, %arg2: memref<16x128xf32, #tpu.memory_space<vmem>>, %arg3: memref<2x128xf32, #tpu.memory_space<vmem>>) attributes {dimension_semantics = [#tpu.dimension_semantics<parallel>], iteration_bounds = array<i64: 1>, scalar_prefetch = 0 : i64, scratch_operands = 0 : i64, tpu.core_type = #tpu.core_type<tc>, window_params = [{transform_indices = @transform_0, window_bounds = array<i64: 2, 16, 256>}, {pipeline_mode = #tpu.pipeline_mode<synchronous>, transform_indices = @transform_1, window_bounds = array<i64: 16, 128>}, {transform_indices = @transform_2, window_bounds = array<i64: 2, 128>}]} {
    %c0 = arith.constant 0 : index
    %c0_0 = arith.constant 0 : index
    %c0_1 = arith.constant 0 : index
    %0 = vector.load %arg1[%c0, %c0_0, %c0_1] : memref<2x16x256xf32, #tpu.memory_space<vmem>>, vector<2x16x256xf32>
    %1 = vector.extract_strided_slice %0 {offsets = [0, 0, 0], sizes = [2, 16, 128], strides = [1, 1, 1]} : vector<2x16x256xf32> to vector<2x16x128xf32>
    %2 = vector.extract_strided_slice %0 {offsets = [0, 0, 128], sizes = [2, 16, 128], strides = [1, 1, 1]} : vector<2x16x256xf32> to vector<2x16x128xf32>
    %3 = arith.addf %1, %2 : vector<2x16x128xf32>
    %cst = arith.constant dense<0.000000e+00> : vector<2x16xf32>
    %4 = vector.multi_reduction <add>, %3, %cst [2] : vector<2x16x128xf32> to vector<2x16xf32>
    %c0_2 = arith.constant 0 : index
    %c0_3 = arith.constant 0 : index
    %5 = vector.load %arg2[%c0_2, %c0_3] : memref<16x128xf32, #tpu.memory_space<vmem>>, vector<16x128xf32>
    %cst_4 = arith.constant dense<0.000000e+00> : vector<2x128xf32>
    %6 = tpu.matmul %4, %5, %cst_4 {dimension_numbers = #tpu.dot_dimension_numbers<[1], [0], [0], [1], [0, 0, 1, 1], [], []>} : vector<2x16xf32>, vector<16x128xf32>, vector<2x128xf32> -> vector<2x128xf32>
    %c0_5 = arith.constant 0 : index
    %c0_6 = arith.constant 0 : index
    %7 = vector.load %arg3[%c0_5, %c0_6] : memref<2x128xf32, #tpu.memory_space<vmem>>, vector<2x128xf32>
    tpu.vector_store %arg3[%c0_5, %c0_6], %6 {strides = array<i32>} : memref<2x128xf32, #tpu.memory_space<vmem>>, vector<2x128xf32>,
    return
  }
  func.func @transform_0(%arg0: i32) -> (i32, i32, i32) {
    %c0_i32 = arith.constant 0 : i32
    %c0_i32_0 = arith.constant 0 : i32
    %c0_i32_1 = arith.constant 0 : i32
    return %arg0, %c0_i32, %c0_i32_0 : i32, i32, i32
  }
  func.func @transform_1(%arg0: i32) -> (i32, i32) {
    %c0_i32 = arith.constant 0 : i32
    %c0_i32_0 = arith.constant 0 : i32
    %c0_i32_1 = arith.constant 0 : i32
    return %c0_i32, %c0_i32_0 : i32, i32
  }
  func.func @transform_2(%arg0: i32) -> (i32, i32) {
    %c0_i32 = arith.constant 0 : i32
    %c0_i32_0 = arith.constant 0 : i32
    return %arg0, %c0_i32 : i32, i32
  }
}

</mosaic_0001>

<llo_original>
// kernel: tpu_custom_call.1
$region0: #{tpu_custom_call.1}
  #allocation0 [shape = 'u32[]', space=smem, size = 0x4, offset = 0x4, fixed_abs, tag = 'smem constant byte address 0x4 - core index']
  #allocation1 [shape = 'u32[72,128]{1,0:T(1,128)}', space=vmem, size = 0x9000, scoped, tag = 'internal scratch']
  %s0 = inlined_call_operand.hbm [shape: f32[2,16,256], index: 0, kind: input, shape index: {}]
  %s1 = inlined_call_operand.hbm [shape: f32[16,128], index: 1, kind: input, shape index: {}]
  %s2 = inlined_call_operand.hbm [shape: f32[2,128], index: 2, kind: output, shape index: {}]
  %s3 = sld [smem:[#allocation0]]
  $region26: #{tpu_custom_call.1} parent=0
    _
  %s5 = ssub.s32 1, %s3
  %s6 = scalar_select 0, %s5, %s3
  $region1: #{tpu_custom_call.1} parent=0
    #allocation2 [shape = 'u8[32768]{0}', space=vmem, size = 0x8000, scoped, tag = 'input window, operand 0, single buffered']
    #allocation3 [shape = 's32[1]{0}', space=sflag, size = 0x4, scoped, tag = 'scoped memory for tpu_custom_call.1']
    #allocation4 [shape = 's32[1]{0}', space=sflag, size = 0x4, scoped, tag = 'scoped memory for tpu_custom_call.1']
    #allocation5 [shape = 'u8[8192]{0}', space=vmem, size = 0x2000, scoped, tag = 'input window, operand 1, single buffered']
    #allocation6 [shape = 's32[1]{0}', space=sflag, size = 0x4, scoped, tag = 'scoped memory for tpu_custom_call.1']
    #allocation7 [shape = 'u8[1024]{0}', space=vmem, size = 0x400, scoped, tag = 'output window, operand 0, single buffered']
    %7 = vsyncpa [#allocation3], 0
    %8 = vsyncpa [#allocation6], 0
    %9 = vsyncpa [#allocation4], 0
    // Predicated region
    $region2: #{tpu_custom_call.1} parent=1 // pred_check
      _
    $region3: #{tpu_custom_call.1} parent=1 // pred_check_branch
      %11 = sbr.rel (0) target = $region5
    $region4: #{tpu_custom_call.1} parent=1 // pred_region
      %13 = vsyncadd [#allocation3], 0
      %s14 = sshll.u32 %s0, 4
      %s15 = int_to_ptr.hbm [resolvable:$true] %s14
      %s16 = sshll.u32 [#allocation2], 4
      %s17 = int_to_ptr.vmem [resolvable:$true] %s16
      %22 = dma.hbm_to_vmem [thread:$0]  %s15, 1024, %s17, [#allocation3], 256, 256, 16
    $region5: #{tpu_custom_call.1} parent=1 // pred_fallthru
      _
    // Predicated region
    $region6: #{tpu_custom_call.1} parent=1 // pred_check
      _
    $region7: #{tpu_custom_call.1} parent=1 // pred_check_branch
      %24 = sbr.rel (0) target = $region9
    $region8: #{tpu_custom_call.1} parent=1 // pred_region
      %26 = vsyncadd [#allocation6], 0
      %s27 = sshll.u32 %s1, 4
      %s28 = int_to_ptr.hbm [resolvable:$true] %s27
      %s29 = sshll.u32 [#allocation5], 4
      %s30 = int_to_ptr.vmem [resolvable:$true] %s29
      %35 = dma.hbm_to_vmem [thread:$0]  %s28, 256, %s30, [#allocation6], 128, 128, 8
    $region9: #{tpu_custom_call.1} parent=1 // pred_fallthru
      _
    // Predicated region
    $region10: #{tpu_custom_call.1} parent=1 // pred_check
      _
    $region11: #{tpu_custom_call.1} parent=1 // pred_check_branch
      %37 = sbr.rel (0) target = $region13
    $region12: #{tpu_custom_call.1} parent=1 // pred_region
      %39 = dma.done [#allocation3], 1024
    $region13: #{tpu_custom_call.1} parent=1 // pred_fallthru
      _
    // Predicated region
    $region14: #{tpu_custom_call.1} parent=1 // pred_check
      _
    $region15: #{tpu_custom_call.1} parent=1 // pred_check_branch
      %41 = sbr.rel (0) target = $region17
    $region16: #{tpu_custom_call.1} parent=1 // pred_region
      %43 = dma.done [#allocation6], 256
    $region17: #{tpu_custom_call.1} parent=1 // pred_fallthru
      _
    %v44 = vld [vmem:[#allocation2] sm:$0xff]
    %v45 = vld [vmem:[#allocation2 + $0x8] sm:$0xff]
    %v46 = vld [vmem:[#allocation2 + $0x10] sm:$0xff]
    %v47 = vld [vmem:[#allocation2 + $0x18] sm:$0xff]
    %v48 = vld [vmem:[#allocation2 + $0x20] sm:$0xff]
    %v49 = vld [vmem:[#allocation2 + $0x28] sm:$0xff]
    %v50 = vld [vmem:[#allocation2 + $0x30] sm:$0xff]
    %v51 = vld [vmem:[#allocation2 + $0x38] sm:$0xff]
    %v52 = vadd.f32 %v44, %v45
    %v53 = vadd.f32 %v46, %v47
    %v54 = vadd.f32 %v48, %v49
    %v55 = vadd.f32 %v50, %v51
    %56 = vadd.xlane.f32.xlu0 %v52
    %v57 = vpop.xlane.xlu0 %56
    %58 = vadd.xlane.f32.xlu0 %v53
    %v59 = vpop.xlane.xlu0 %58
    %60 = vadd.xlane.f32.xlu0 %v54
    %v61 = vpop.xlane.xlu0 %60
    %62 = vadd.xlane.f32.xlu0 %v55
    %v63 = vpop.xlane.xlu0 %62
    %v64 = vld [vmem:[#allocation5] sm:$0xff]
    %v65 = vld [vmem:[#allocation5 + $0x8] sm:$0xff]
    %v70 = vlaneseq
    %v71 = vand.u32 %v70, 127
    %v72 = vperm.slane %v57, %v71
    %v73 = vadd.s32 %v71, 4294967288
    %v74 = vperm.slane %v59, %v73
    %vm75 = vcmask 130112
    %v76 = vsel %vm75, %v74, %v72
    %v77 = vperm.slane %v61, %v71
    %v78 = vperm.slane %v63, %v73
    %v79 = vsel %vm75, %v78, %v77
    %vm80 = vcmask 1041409
    %v81 = vsel %vm80, %v79, %v76
    %vm82 = vcmask 130048
    %v83 = vsel %vm82, %v81, 0
    %85 = vmatpush.msra.mxu0 0.0
    %86 = vmatpush.msra.mxu0 0.0
    %87 = vmatpush.msra.mxu0 0.0
    %88 = vmatpush.msra.mxu0 0.0
    %89 = vmatpush.msra.mxu0 0.0
    %90 = vmatpush.msra.mxu0 0.0
    %91 = vmatpush.msra.mxu0 0.0
    %92 = vmatpush.msra.mxu0 0.0
    %93 = vmatpush.msra.mxu0 0.0
    %94 = vmatpush.msra.mxu0 0.0
    %95 = vmatpush.msra.mxu0 0.0
    %96 = vmatpush.msra.mxu0 0.0
    %97 = vmatpush.msra.mxu0 0.0
    %98 = vmatpush.msra.mxu0 0.0
    %99 = vmatpush.msra.mxu0 %v65
    %100 = vmatpush.msra.mxu0 %v64
    %101 = vmatmul.f32.gmra.mxu0 %v83
    %v102 = vpop.f32.mrf.mxu0
    %v103 = vadd.f32 0.0, %v102
    %104 = vdwg.mxu0
    %105 = vst [vmem:[#allocation7] sm:$0x3] %v103
    // Predicated region
    $region18: #{tpu_custom_call.1} parent=1 // pred_check
      _
    $region19: #{tpu_custom_call.1} parent=1 // pred_check_branch
      %107 = sbr.rel (0) target = $region21
    $region20: #{tpu_custom_call.1} parent=1 // pred_region
      %109 = vsyncadd [#allocation4], 0
      %s111 = sshll.u32 [#allocation7], 4
      %s112 = int_to_ptr.vmem [resolvable:$true] %s111
      %s113 = sshll.u32 %s2, 4
      %s114 = int_to_ptr.hbm [resolvable:$true] %s113
      %116 = dma.vmem_to_hbm [thread:$0]  %s112, 32, %s114, [#allocation4]
    $region21: #{tpu_custom_call.1} parent=1 // pred_fallthru
      _
    // Predicated region
    $region22: #{tpu_custom_call.1} parent=1 // pred_check
      _
    $region23: #{tpu_custom_call.1} parent=1 // pred_check_branch
      %118 = sbr.rel (0) target = $region25
    $region24: #{tpu_custom_call.1} parent=1 // pred_region
      %120 = dma.done [#allocation4], 32
    $region25: #{tpu_custom_call.1} parent=1 // pred_fallthru
      _
    %121 = vsyncpa [#allocation3], 1
    %122 = vsyncpa [#allocation6], 1
    %123 = vsyncpa [#allocation4], 1

</llo_original>
